<compile_context>
chip_gen: v7x
topology: tpu7x:2x2x1
jax: 0.10.0
libtpu: 0.0.40
codegen_flags: <defaults>
</compile_context>

<pallas_src>
import jax
import jax.numpy as jnp
from jax.experimental import pallas as pl
from jax.experimental.pallas import tpu as pltpu


def _round_up(x, m):
    return (x + m - 1) // m * m


def _make_matmul_kernel(has_bias):
    """Tiled matmul kernel: grid = (M tiles, N tiles, K tiles), K last (reduction)."""
    if has_bias:
        def kernel(x_ref, w_ref, b_ref, o_ref, acc_ref):
            @pl.when(pl.program_id(2) == 0)
            def _():
                # Fold the bias into the accumulator init (the init pass is already
                # paid; this removes the epilogue VPU add per output tile).
                acc_ref[...] = jnp.broadcast_to(b_ref[...], acc_ref.shape)

            acc_ref[...] += jnp.dot(x_ref[...], w_ref[...],
                                    preferred_element_type=jnp.float32)

            @pl.when(pl.program_id(2) == pl.num_programs(2) - 1)
            def _():
                o_ref[...] = acc_ref[...].astype(o_ref.dtype)
    else:
        def kernel(x_ref, w_ref, o_ref, acc_ref):
            @pl.when(pl.program_id(2) == 0)
            def _():
                acc_ref[...] = jnp.zeros_like(acc_ref)

            acc_ref[...] += jnp.dot(x_ref[...], w_ref[...],
                                    preferred_element_type=jnp.float32)

            @pl.when(pl.program_id(2) == pl.num_programs(2) - 1)
            def _():
                o_ref[...] = acc_ref[...].astype(o_ref.dtype)
    return kernel


def _choose_tiles(M_al, N_al, K_al, in_bytes, out_bytes, budget,
                  tm_req=None, tn_req=None, tk_req=None):
    """Pick (tm, tn, tk): lane-dense tn (up to full padded N), deep tk for
    decode-sized M, and tm grown until the double-buffered tile set hits the
    VMEM budget.  Explicit requests are clamped to the aligned dims."""
    # N tile: full output width when it fits -> x streams from HBM exactly once.
    if tn_req is not None:
        tn = min(_round_up(tn_req, 128), N_al)
    else:
        tn = min(2048, N_al)

    # K tile: in the small-M (decode) regime the kernel is weight-bandwidth bound,
    # so spend VMEM on K depth (fewer, bigger weight DMAs) instead of tm.
    if tk_req is not None:
        tk = min(_round_up(tk_req, 128), K_al)
    else:
        tk = min(2048 if M_al <= 256 else 512, K_al)

    if tm_req is not None:
        tm = min(_round_up(tm_req, 8), M_al)
    else:
        tm = min(1024, M_al)

    def need(tm_, tn_, tk_):
        return (2 * tm_ * tk_ * in_bytes      # x tiles, double-buffered
                + 2 * tk_ * tn_ * in_bytes    # w tiles, double-buffered
                + 2 * tm_ * tn_ * out_bytes   # out tiles, double-buffered
                + tm_ * tn_ * 4               # f32 accumulator
                + 2 * 8 * tn_ * 4)            # bias tile

    # Shrink auto-chosen dims until the tile set fits the budget.
    while tm_req is None and tm > 8 and need(tm, tn, tk) > budget:
        tm = max(8, _round_up(tm // 2, 8))
    while tk_req is None and tk > 128 and need(tm, tn, tk) > budget:
        tk = max(128, _round_up(tk // 2, 128))
    while tn_req is None and tn > 128 and need(tm, tn, tk) > budget:
        tn = max(128, _round_up(tn // 2, 128))

    # If the parallel (i, j) grid collapses to a single tile, split N so a
    # 2-TensorCore chip (v7x) can still shard the work; harmless on v5e/v6e.
    if (tm_req is None and tn_req is None
            and M_al <= tm and N_al <= tn and N_al >= 256):
        tn = _round_up((N_al + 1) // 2, 128)

    return tm, tn, tk, need(tm, tn, tk)


def prepare_fused_weight(pre_weight, update_weight, post_weight, *,
                         compute_dtype=jnp.bfloat16):
    """Fuse the column-split weight once: concat + pre-transpose to [K, N] + cast.

    Weights are static between optimizer steps — call this once per step and pass
    the result as `fused_weight_t` to avoid re-streaming the full K x N weight
    through HBM (concat + transpose + cast) on every forward.  stop_gradient on
    pre/post preserves the freeze semantics of the module.
    """
    pre = jax.lax.stop_gradient(pre_weight)
    post = jax.lax.stop_gradient(post_weight)
    w_t = jnp.concatenate([pre, update_weight, post], axis=1).T  # [K, N]
    if compute_dtype is not None:
        w_t = w_t.astype(compute_dtype)
    return w_t


def linear_freeze_column_forward(x, pre_weight=None, update_weight=None,
                                 post_weight=None, bias=None, *,
                                 fused_weight_t=None,
                                 tm=None, tn=None, tk=None,
                                 compute_dtype=jnp.bfloat16,
                                 vmem_tile_budget_bytes=40 * 1024 * 1024):
    """Pallas equivalent of LinearFreezeColumnWrapper.forward.

    x:              [..., K]  (K = Kp + Ku + Kq)
    pre_weight:     [N, Kp]   (frozen)      \
    update_weight:  [N, Ku]   (trainable)    } or pass fused_weight_t = [K, N]
    post_weight:    [N, Kq]   (frozen)      /
    bias:           [N] or None
    returns         [..., N]  in x.dtype

    compute_dtype: MXU operand dtype.  Default bf16 gives full MXU rate and half
    the HBM bytes; accumulation is always f32.  Pass jnp.float32 (or None to keep
    the input dtype) for exact-f32 operands.
    """
    orig_shape = x.shape
    K = orig_shape[-1]

    if fused_weight_t is None:
        w_t = prepare_fused_weight(pre_weight, update_weight, post_weight,
                                   compute_dtype=compute_dtype)
    else:
        w_t = fused_weight_t
    assert w_t.shape[0] == K, "fused weight must be [K, N]"
    N = w_t.shape[1]

    out_dtype = x.dtype
    x2d = x.reshape(-1, K)
    M = x2d.shape[0]

    if compute_dtype is not None:
        x2d = x2d.astype(compute_dtype)
        w_t = w_t.astype(compute_dtype)  # no-op if prepared with the same dtype

    in_bytes = jnp.dtype(x2d.dtype).itemsize
    out_bytes = jnp.dtype(out_dtype).itemsize

    M_al = _round_up(M, 8)
    N_al = _round_up(N, 128)
    K_al = _round_up(K, 128)

    tm, tn, tk, vmem_need = _choose_tiles(
        M_al, N_al, K_al, in_bytes, out_bytes, vmem_tile_budget_bytes,
        tm_req=tm, tn_req=tn, tk_req=tk)

    M_pad = _round_up(M, tm)
    N_pad = _round_up(N, tn)
    K_pad = _round_up(K, tk)

    # Pad the already-cast arrays so cast+pad materialize once.
    if (M_pad, K_pad) != (M, K):
        x2d = jnp.pad(x2d, ((0, M_pad - M), (0, K_pad - K)))
    if (K_pad, N_pad) != w_t.shape:
        w_t = jnp.pad(w_t, ((0, K_pad - K), (0, N_pad - N)))

    has_bias = bias is not None
    args = [x2d, w_t]
    in_specs = [
        # x tile: re-read once per N panel; with tn == N_pad it streams from HBM once.
        pl.BlockSpec((tm, tk), lambda i, j, k: (i, k)),
        # weight tile: re-streamed once per M tile (k is the innermost grid axis).
        pl.BlockSpec((tk, tn), lambda i, j, k: (k, j)),
    ]
    if has_bias:
        b2d = bias.reshape(1, N).astype(jnp.float32)
        if N_pad != N:
            b2d = jnp.pad(b2d, ((0, 0), (0, N_pad - N)))
        args.append(b2d)
        in_specs.append(pl.BlockSpec((1, tn), lambda i, j, k: (0, j)))

    grid = (M_pad // tm, N_pad // tn, K_pad // tk)

    cost = pl.CostEstimate(
        flops=2 * M_pad * N_pad * K_pad,
        transcendentals=0,
        bytes_accessed=(M_pad * K_pad * in_bytes * (N_pad // tn)
                        + K_pad * N_pad * in_bytes * (M_pad // tm)
                        + M_pad * N_pad * out_bytes))

    vmem_limit = int(min(max(vmem_need + 4 * 1024 * 1024, 32 * 1024 * 1024),
                         128 * 1024 * 1024))

    out = pl.pallas_call(
        _make_matmul_kernel(has_bias),
        out_shape=jax.ShapeDtypeStruct((M_pad, N_pad), out_dtype),
        grid_spec=pltpu.PrefetchScalarGridSpec(
            num_scalar_prefetch=0,
            grid=grid,
            in_specs=in_specs,
            out_specs=pl.BlockSpec((tm, tn), lambda i, j, k: (i, j)),
            scratch_shapes=[pltpu.VMEM((tm, tn), jnp.float32)],
        ),
        compiler_params=pltpu.CompilerParams(
            dimension_semantics=("parallel", "parallel", "arbitrary"),
            vmem_limit_bytes=vmem_limit),
        cost_estimate=cost,
    )(*args)

    out = out[:M, :N]
    return out.reshape(*orig_shape[:-1], N)


if __name__ == "__main__":
    key = jax.random.PRNGKey(0)
    k_x, k_w, k_b, k_x2, k_w2, k_x3, k_w3, k_b3 = jax.random.split(key, 8)

    # --- Case 1: nn.Linear(32, 32), frozen_columns=slice(8, 24), bias,
    #             default bf16 MXU path.
    batch, seq, K, N = 2, 8, 32, 32
    frz_start, frz_stop = 8, 24

    x = jax.random.normal(k_x, (batch, seq, K), dtype=jnp.float32)
    full_weight = jax.random.normal(k_w, (N, K), dtype=jnp.float32) * 0.1
    bias = jax.random.normal(k_b, (N,), dtype=jnp.float32) * 0.1

    pre_w = full_weight[:, :frz_start]
    upd_w = full_weight[:, frz_start:frz_stop]
    post_w = full_weight[:, frz_stop:]

    out = linear_freeze_column_forward(x, pre_w, upd_w, post_w, bias)
    jax.block_until_ready(out)

    ref = jnp.einsum("bsk,nk->bsn", x, full_weight,
                     precision=jax.lax.Precision.HIGHEST) + bias
    assert out.shape == (batch, seq, N)
    assert jnp.allclose(out, ref, atol=3e-2, rtol=3e-2), "mismatch vs reference (case 1)"

    # Pre-fused (cached) weight path must match the per-call fusion.
    w_fused = prepare_fused_weight(pre_w, upd_w, post_w)
    out_cached = linear_freeze_column_forward(x, bias=bias, fused_weight_t=w_fused)
    jax.block_until_ready(out_cached)
    assert jnp.allclose(out, out_cached, atol=1e-6, rtol=0.0), \
        "fused-weight path mismatch (case 1)"

    # --- Case 2: bias=None + explicit f32 operands + tk override -> multi-step
    #             K reduction (exercises accumulator init/finalize across k).
    K2, N2 = 160, 96
    s0, s1 = 64, 128  # frozen_columns = slice(64, 128)
    x2 = jax.random.normal(k_x2, (batch, seq, K2), dtype=jnp.float32)
    w2 = jax.random.normal(k_w2, (N2, K2), dtype=jnp.float32) * 0.1

    out2 = linear_freeze_column_forward(
        x2, w2[:, :s0], w2[:, s0:s1], w2[:, s1:], None,
        tk=128, compute_dtype=jnp.float32)
    jax.block_until_ready(out2)

    ref2 = jnp.einsum("bsk,nk->bsn", x2, w2, precision=jax.lax.Precision.HIGHEST)
    assert out2.shape == (batch, seq, N2)
    assert jnp.allclose(out2, ref2, atol=5e-4, rtol=5e-4), "mismatch vs reference (case 2)"

    # --- Case 3: decode-shaped (tiny M) with bias -> exercises the one-pass-weight
    #             tk heuristic and the N-split for 2-TensorCore (v7x) sharding.
    M3, K3, N3 = 4, 384, 256
    x3 = jax.random.normal(k_x3, (M3, K3), dtype=jnp.float32)
    w3 = jax.random.normal(k_w3, (N3, K3), dtype=jnp.float32) * 0.05
    b3 = jax.random.normal(k_b3, (N3,), dtype=jnp.float32) * 0.1

    out3 = linear_freeze_column_forward(
        x3, w3[:, :128], w3[:, 128:256], w3[:, 256:], b3)
    jax.block_until_ready(out3)

    ref3 = jnp.einsum("mk,nk->mn", x3, w3,
                      precision=jax.lax.Precision.HIGHEST) + b3
    assert out3.shape == (M3, N3)
    assert jnp.allclose(out3, ref3, atol=6e-2, rtol=6e-2), "mismatch vs reference (case 3)"

    print("KERNEL_OK")
</pallas_src>

<mosaic_0001>
module attributes {stable_mosaic.version = 11 : i64} {
  func.func @kernel(%arg0: i32, %arg1: i32, %arg2: i32, %arg3: memref<16x128xbf16, #tpu.memory_space<vmem>>, %arg4: memref<128x128xbf16, #tpu.memory_space<vmem>>, %arg5: memref<1x128xf32, #tpu.memory_space<vmem>>, %arg6: memref<16x128xf32, #tpu.memory_space<vmem>>, %arg7: memref<16x128xf32, #tpu.memory_space<vmem>>) attributes {dimension_semantics = [#tpu.dimension_semantics<parallel>, #tpu.dimension_semantics<parallel>, #tpu.dimension_semantics<arbitrary>], iteration_bounds = array<i64: 1, 1, 1>, scalar_prefetch = 0 : i64, scratch_operands = 1 : i64, tpu.core_type = #tpu.core_type<tc>, window_params = [{transform_indices = @transform_0, window_bounds = array<i64: 16, 128>}, {transform_indices = @transform_1, window_bounds = array<i64: 128, 128>}, {transform_indices = @transform_2, window_bounds = array<i64: 1, 128>}, {transform_indices = @transform_3, window_bounds = array<i64: 16, 128>}]} {
    %c0_i32 = arith.constant 0 : i32
    %0 = arith.cmpi eq, %arg2, %c0_i32 : i32
    %1 = arith.extui %0 : i1 to i32
    %c0_i32_0 = arith.constant 0 : i32
    %2 = arith.cmpi ne, %1, %c0_i32_0 : i32
    scf.if %2 {
      %c0_10 = arith.constant 0 : index
      %c0_11 = arith.constant 0 : index
      %12 = vector.load %arg5[%c0_10, %c0_11] : memref<1x128xf32, #tpu.memory_space<vmem>>, vector<1x128xf32>
      %13 = vector.shape_cast %12 : vector<1x128xf32> to vector<1x128xf32>
      %14 = vector.broadcast %13 : vector<1x128xf32> to vector<16x128xf32>
      %c0_12 = arith.constant 0 : index
      %c0_13 = arith.constant 0 : index
      %15 = vector.load %arg7[%c0_12, %c0_13] : memref<16x128xf32, #tpu.memory_space<vmem>>, vector<16x128xf32>
      tpu.vector_store %arg7[%c0_12, %c0_13], %14 {strides = array<i32>} : memref<16x128xf32, #tpu.memory_space<vmem>>, vector<16x128xf32>,
    } else {
    }
    %c0 = arith.constant 0 : index
    %c0_1 = arith.constant 0 : index
    %3 = vector.load %arg7[%c0, %c0_1] : memref<16x128xf32, #tpu.memory_space<vmem>>, vector<16x128xf32>
    %c0_2 = arith.constant 0 : index
    %c0_3 = arith.constant 0 : index
    %4 = vector.load %arg3[%c0_2, %c0_3] : memref<16x128xbf16, #tpu.memory_space<vmem>>, vector<16x128xbf16>
    %c0_4 = arith.constant 0 : index
    %c0_5 = arith.constant 0 : index
    %5 = vector.load %arg4[%c0_4, %c0_5] : memref<128x128xbf16, #tpu.memory_space<vmem>>, vector<128x128xbf16>
    %cst = arith.constant dense<0.000000e+00> : vector<16x128xf32>
    %6 = tpu.matmul %4, %5, %cst {dimension_numbers = #tpu.dot_dimension_numbers<[1], [0], [0], [1], [0, 0, 1, 1], [], []>} : vector<16x128xbf16>, vector<128x128xbf16>, vector<16x128xf32> -> vector<16x128xf32>
    %7 = arith.addf %3, %6 : vector<16x128xf32>
    %c0_6 = arith.constant 0 : index
    %c0_7 = arith.constant 0 : index
    %8 = vector.load %arg7[%c0_6, %c0_7] : memref<16x128xf32, #tpu.memory_space<vmem>>, vector<16x128xf32>
    tpu.vector_store %arg7[%c0_6, %c0_7], %7 {strides = array<i32>} : memref<16x128xf32, #tpu.memory_space<vmem>>, vector<16x128xf32>,
    %c0_i32_8 = arith.constant 0 : i32
    %9 = arith.cmpi eq, %arg2, %c0_i32_8 : i32
    %10 = arith.extui %9 : i1 to i32
    %c0_i32_9 = arith.constant 0 : i32
    %11 = arith.cmpi ne, %10, %c0_i32_9 : i32
    scf.if %11 {
      %c0_10 = arith.constant 0 : index
      %c0_11 = arith.constant 0 : index
      %12 = vector.load %arg7[%c0_10, %c0_11] : memref<16x128xf32, #tpu.memory_space<vmem>>, vector<16x128xf32>
      %c0_12 = arith.constant 0 : index
      %c0_13 = arith.constant 0 : index
      %13 = vector.load %arg6[%c0_12, %c0_13] : memref<16x128xf32, #tpu.memory_space<vmem>>, vector<16x128xf32>
      tpu.vector_store %arg6[%c0_12, %c0_13], %12 {strides = array<i32>} : memref<16x128xf32, #tpu.memory_space<vmem>>, vector<16x128xf32>,
    } else {
    }
    return
  }
  func.func @transform_0(%arg0: i32, %arg1: i32, %arg2: i32) -> (i32, i32) {
    %c0_i32 = arith.constant 0 : i32
    return %arg0, %arg2 : i32, i32
  }
  func.func @transform_1(%arg0: i32, %arg1: i32, %arg2: i32) -> (i32, i32) {
    %c0_i32 = arith.constant 0 : i32
    return %arg2, %arg1 : i32, i32
  }
  func.func @transform_2(%arg0: i32, %arg1: i32, %arg2: i32) -> (i32, i32) {
    %c0_i32 = arith.constant 0 : i32
    %c0_i32_0 = arith.constant 0 : i32
    return %c0_i32, %arg1 : i32, i32
  }
  func.func @transform_3(%arg0: i32, %arg1: i32, %arg2: i32) -> (i32, i32) {
    %c0_i32 = arith.constant 0 : i32
    return %arg0, %arg1 : i32, i32
  }
}

</mosaic_0001>

<llo_original>
// kernel: tpu_custom_call.1
$region0: #{tpu_custom_call.1}
  #allocation0 [shape = 'u32[]', space=smem, size = 0x4, offset = 0x4, fixed_abs, tag = 'smem constant byte address 0x4 - core index']
  #allocation1 [shape = 'u32[144,128]{1,0:T(1,128)}', space=vmem, size = 0x12000, scoped, tag = 'internal scratch']
  #allocation2 [shape = 'f32[16,128]{1,0:T(8,128)}', space=vmem, size = 0x2000, scoped, tag = 'scratch operand']
  %s0 = inlined_call_operand.hbm [shape: bf16[16,128], index: 0, kind: input, shape index: {}]
  %s1 = inlined_call_operand.hbm [shape: bf16[128,128], index: 1, kind: input, shape index: {}]
  %s2 = inlined_call_operand.vmem [shape: f32[1,128], index: 2, kind: input, shape index: {}]
  %s3 = inlined_call_operand.hbm [shape: f32[16,128], index: 3, kind: output, shape index: {}]
  %s4 = sld [smem:[#allocation0]]
  $region38: #{tpu_custom_call.1} parent=0
    _
  %s6 = ssub.s32 1, %s4
  %s7 = scalar_select 0, %s6, %s4
  $region1: #{tpu_custom_call.1} parent=0
    #allocation3 [shape = 'u8[4096]{0}', space=vmem, size = 0x1000, scoped, tag = 'input window, operand 0, single buffered']
    #allocation4 [shape = 's32[1]{0}', space=sflag, size = 0x4, scoped, tag = 'scoped memory for tpu_custom_call.1']
    #allocation5 [shape = 's32[1]{0}', space=sflag, size = 0x4, scoped, tag = 'scoped memory for tpu_custom_call.1']
    #allocation6 [shape = 'u8[32768]{0}', space=vmem, size = 0x8000, scoped, tag = 'input window, operand 1, single buffered']
    #allocation7 [shape = 's32[1]{0}', space=sflag, size = 0x4, scoped, tag = 'scoped memory for tpu_custom_call.1']
    #allocation8 [shape = 'u8[8192]{0}', space=vmem, size = 0x2000, scoped, tag = 'output window, operand 0, single buffered']
    %8 = vsyncpa [#allocation4], 0
    %9 = vsyncpa [#allocation7], 0
    %10 = vsyncpa [#allocation5], 0
    // Predicated region
    $region2: #{tpu_custom_call.1} parent=1 // pred_check
      _
    $region3: #{tpu_custom_call.1} parent=1 // pred_check_branch
      %12 = sbr.rel (0) target = $region5
    $region4: #{tpu_custom_call.1} parent=1 // pred_region
      %s14 = ssub.s32 128, 128
      %15 = vsyncadd [#allocation4], %s14
      %s16 = sshll.u32 [#allocation3], 4
      %s17 = int_to_ptr.vmem [resolvable:$true] %s16
      %22 = dma.hbm_to_vmem [thread:$0]  %s0, 128, %s17, [#allocation4], 64, 64, 4
    $region5: #{tpu_custom_call.1} parent=1 // pred_fallthru
      _
    // Predicated region
    $region6: #{tpu_custom_call.1} parent=1 // pred_check
      _
    $region7: #{tpu_custom_call.1} parent=1 // pred_check_branch
      %24 = sbr.rel (0) target = $region9
    $region8: #{tpu_custom_call.1} parent=1 // pred_region
      %s26 = ssub.s32 1024, 1024
      %27 = vsyncadd [#allocation7], %s26
      %s28 = sshll.u32 [#allocation6], 4
      %s29 = int_to_ptr.vmem [resolvable:$true] %s28
      %34 = dma.hbm_to_vmem [thread:$0]  %s1, 1024, %s29, [#allocation7], 64, 64, 4
    $region9: #{tpu_custom_call.1} parent=1 // pred_fallthru
      _
    // Predicated region
    $region10: #{tpu_custom_call.1} parent=1 // pred_check
      _
    $region11: #{tpu_custom_call.1} parent=1 // pred_check_branch
      %36 = sbr.rel (0) target = $region13
    $region12: #{tpu_custom_call.1} parent=1 // pred_region
      _
    $region13: #{tpu_custom_call.1} parent=1 // pred_fallthru
      _
    // Predicated region
    $region14: #{tpu_custom_call.1} parent=1 // pred_check
      _
    $region15: #{tpu_custom_call.1} parent=1 // pred_check_branch
      %38 = sbr.rel (0) target = $region17
    $region16: #{tpu_custom_call.1} parent=1 // pred_region
      %39 = dma.done [#allocation4], 128
    $region17: #{tpu_custom_call.1} parent=1 // pred_fallthru
      _
    // Predicated region
    $region18: #{tpu_custom_call.1} parent=1 // pred_check
      _
    $region19: #{tpu_custom_call.1} parent=1 // pred_check_branch
      %41 = sbr.rel (0) target = $region21
    $region20: #{tpu_custom_call.1} parent=1 // pred_region
      %42 = dma.done [#allocation7], 1024
    $region21: #{tpu_custom_call.1} parent=1 // pred_fallthru
      _
    %p44 = scmp.eq.s32.totalorder 0, 0
    // Predicated region
    $region22: #{tpu_custom_call.1} parent=1 // pred_check
      %p45 = pneg %p44
    $region23: #{tpu_custom_call.1} parent=1 // pred_check_branch
      %47 = sbr.rel (%p45) target = $region25
    $region24: #{tpu_custom_call.1} parent=1 // pred_region
      %v48 = vld [vmem:[%s2] sm:$0x1]
      %v50 = vlaneseq
      %v51 = vshrl.u32 %v50, 7
      %v52 = vsub.s32 0, %v51
      %v53 = vrot.slane %v48, %v52
      %55 = vst [vmem:[#allocation2] sm:$0xff] %v53
      %56 = vst [vmem:[#allocation2 + $0x8] sm:$0xff] %v53
    $region25: #{tpu_custom_call.1} parent=1 // pred_fallthru
      _
    %v57 = vld [vmem:[#allocation2] sm:$0xff]
    %v58 = vld [vmem:[#allocation2 + $0x8] sm:$0xff]
    %v59 = vld [vmem:[#allocation3] sm:$0xf]
    %v60 = vld [vmem:[#allocation3 + $0x4] sm:$0xf]
    %v61 = vld [vmem:[#allocation6] sm:$0xf]
    %v62 = vld [vmem:[#allocation6 + $0x4] sm:$0xf]
    %v63 = vld [vmem:[#allocation6 + $0x8] sm:$0xf]
    %v64 = vld [vmem:[#allocation6 + $0xc] sm:$0xf]
    %v65 = vld [vmem:[#allocation6 + $0x10] sm:$0xf]
    %v66 = vld [vmem:[#allocation6 + $0x14] sm:$0xf]
    %v67 = vld [vmem:[#allocation6 + $0x18] sm:$0xf]
    %v68 = vld [vmem:[#allocation6 + $0x1c] sm:$0xf]
    %v69 = vld [vmem:[#allocation6 + $0x20] sm:$0xf]
    %v70 = vld [vmem:[#allocation6 + $0x24] sm:$0xf]
    %v71 = vld [vmem:[#allocation6 + $0x28] sm:$0xf]
    %v72 = vld [vmem:[#allocation6 + $0x2c] sm:$0xf]
    %v73 = vld [vmem:[#allocation6 + $0x30] sm:$0xf]
    %v74 = vld [vmem:[#allocation6 + $0x34] sm:$0xf]
    %v75 = vld [vmem:[#allocation6 + $0x38] sm:$0xf]
    %v76 = vld [vmem:[#allocation6 + $0x3c] sm:$0xf]
    %v79 = vunpack.c.l.b16 %v59
    %v80 = vunpack.c.l.b16 %v60
    %v81 = vpack.c.b16 %v80, %v79
    %v99 = vunpack.c.l.b16 %v61
    %v100 = vunpack.c.l.b16 %v62
    %v101 = vunpack.c.l.b16 %v63
    %v102 = vunpack.c.l.b16 %v64
    %v103 = vunpack.c.l.b16 %v65
    %v104 = vunpack.c.l.b16 %v66
    %v105 = vunpack.c.l.b16 %v67
    %v106 = vunpack.c.l.b16 %v68
    %v107 = vunpack.c.l.b16 %v69
    %v108 = vunpack.c.l.b16 %v70
    %v109 = vunpack.c.l.b16 %v71
    %v110 = vunpack.c.l.b16 %v72
    %v111 = vunpack.c.l.b16 %v73
    %v112 = vunpack.c.l.b16 %v74
    %v113 = vunpack.c.l.b16 %v75
    %v114 = vunpack.c.l.b16 %v76
    %v115 = vpack.c.b16 %v100, %v99
    %v116 = vpack.c.b16 %v102, %v101
    %v117 = vpack.c.b16 %v104, %v103
    %v118 = vpack.c.b16 %v106, %v105
    %v119 = vpack.c.b16 %v108, %v107
    %v120 = vpack.c.b16 %v110, %v109
    %v121 = vpack.c.b16 %v112, %v111
    %v122 = vpack.c.b16 %v114, %v113
    %131 = vmatprep.subr.bf16.mxu0 0
    %132 = vmatpush1.bf16.msra.mxu0 %v115
    %133 = vmatprep.subr.bf16.mxu0 0
    %134 = vmatpush1.bf16.msra.mxu0 %v116
    %135 = vmatprep.subr.bf16.mxu0 0
    %136 = vmatpush1.bf16.msra.mxu0 %v117
    %137 = vmatprep.subr.bf16.mxu0 0
    %138 = vmatpush1.bf16.msra.mxu0 %v118
    %139 = vmatprep.subr.bf16.mxu0 0
    %140 = vmatpush1.bf16.msra.mxu0 %v119
    %141 = vmatprep.subr.bf16.mxu0 0
    %142 = vmatpush1.bf16.msra.mxu0 %v120
    %143 = vmatprep.subr.bf16.mxu0 0
    %144 = vmatpush1.bf16.msra.mxu0 %v121
    %145 = vmatprep.subr.bf16.mxu0 0
    %146 = vmatpush1.bf16.msra.mxu0 %v122
    %147 = vmatprep.subr.bf16.mxu0 0
    %148 = vmatpush1.bf16.msra.mxu0 0
    %149 = vmatprep.subr.bf16.mxu0 0
    %150 = vmatpush1.bf16.msra.mxu0 0
    %151 = vmatprep.subr.bf16.mxu0 0
    %152 = vmatpush1.bf16.msra.mxu0 0
    %153 = vmatprep.subr.bf16.mxu0 0
    %154 = vmatpush1.bf16.msra.mxu0 0
    %155 = vmatprep.subr.bf16.mxu0 0
    %156 = vmatpush1.bf16.msra.mxu0 0
    %157 = vmatprep.subr.bf16.mxu0 0
    %158 = vmatpush1.bf16.msra.mxu0 0
    %159 = vmatprep.subr.bf16.mxu0 0
    %160 = vmatpush1.bf16.msra.mxu0 0
    %161 = vmatprep.subr.bf16.mxu0 0
    %162 = vmatpush1.bf16.msra.mxu0 0
    %163 = vmatprep.mubr.bf16.mxu0 0
    %164 = vmatmul.mubr.bf16.gmra.mrb[0].mxu0 %v81
    %v165 = vpop.f32.mrb[0].mxu0
    %v166 = vadd.f32 0.0, %v165
    %v167 = vpop.f32.mrb[0].mxu0
    %v168 = vpop.f32.mrb[0].mxu0
    %v169 = vadd.f32 0.0, %v168
    %v170 = vpop.f32.mrb[0].mxu0
    %171 = vdwg.mxu0
    %v172 = vadd.f32 %v57, %v166
    %v173 = vadd.f32 %v58, %v169
    %174 = vst [vmem:[#allocation2] sm:$0xff] %v172
    %175 = vst [vmem:[#allocation2 + $0x8] sm:$0xff] %v173
    // Predicated region
    $region26: #{tpu_custom_call.1} parent=1 // pred_check
      %p176 = pneg %p44
    $region27: #{tpu_custom_call.1} parent=1 // pred_check_branch
      %178 = sbr.rel (%p176) target = $region29
    $region28: #{tpu_custom_call.1} parent=1 // pred_region
      %v179 = vld [vmem:[#allocation2] sm:$0xff]
      %v180 = vld [vmem:[#allocation2 + $0x8] sm:$0xff]
      %181 = vst [vmem:[#allocation8] sm:$0xff] %v179
      %182 = vst [vmem:[#allocation8 + $0x8] sm:$0xff] %v180
    $region29: #{tpu_custom_call.1} parent=1 // pred_fallthru
      _
    // Predicated region
    $region30: #{tpu_custom_call.1} parent=1 // pred_check
      _
    $region31: #{tpu_custom_call.1} parent=1 // pred_check_branch
      %184 = sbr.rel (0) target = $region33
    $region32: #{tpu_custom_call.1} parent=1 // pred_region
      %s186 = ssub.s32 256, 256
      %187 = vsyncadd [#allocation5], %s186
      %s188 = sshll.u32 [#allocation8], 4
      %s189 = int_to_ptr.vmem [resolvable:$true] %s188
      %194 = dma.vmem_to_hbm [thread:$0]  %s189, 256, %s3, [#allocation5], 128, 128, 8
    $region33: #{tpu_custom_call.1} parent=1 // pred_fallthru
      _
    // Predicated region
    $region34: #{tpu_custom_call.1} parent=1 // pred_check
      _
    $region35: #{tpu_custom_call.1} parent=1 // pred_check_branch
      %196 = sbr.rel (0) target = $region37
    $region36: #{tpu_custom_call.1} parent=1 // pred_region
      %197 = dma.done [#allocation5], 256
    $region37: #{tpu_custom_call.1} parent=1 // pred_fallthru
      _
    %198 = vsyncpa [#allocation4], 1
    %199 = vsyncpa [#allocation7], 1
    %200 = vsyncpa [#allocation5], 1

</llo_original>
